<compile_context>
chip_gen: v5e
topology: v5e:2x2
jax: 0.10.0
libtpu: 0.0.40
codegen_flags: <defaults>
</compile_context>

<pallas_src>
import numpy as np
import jax
import jax.numpy as jnp
from jax.experimental import pallas as pl
from jax.experimental.pallas import tpu as pltpu

CIN = 32
COUT = 32
K = 2

# f32 matches the torch module's numerics. Set to jnp.bfloat16 for large
# shapes (MXU is bf16-native); f32 accumulation is kept either way.
MATMUL_DTYPE = jnp.float32


def _make_kernel(m_fat, wp):
    tap_offsets = [kh * wp + kw for kh in range(K) for kw in range(K)]

    def kernel(x_ref, w_ref, b_ref, o_ref):
        # x_ref: (1, CIN, XLEN)   zero-padded input, flat fat rows of width WP
        # w_ref: (COUT, K*K*CIN)  im2col weights (flipped kernel)
        # b_ref: (COUT, 1)        bias
        # o_ref: (1, COUT, M_FAT) fat output block (junk cols dropped in wrapper)
        xflat = x_ref[0]                                             # (CIN, XLEN)

        # Each tap of the transposed conv is a constant lane shift of the flat
        # padded input; 4 slices + 1 sublane concat -> one 128-deep operand.
        patch = jnp.concatenate(
            [xflat[:, off:off + m_fat] for off in tap_offsets], axis=0)

        y = jnp.dot(w_ref[...], patch,
                    preferred_element_type=jnp.float32)              # (COUT, M_FAT)
        y = y + b_ref[...]                                           # bias epilogue
        y = jnp.where(y > 0.0, y, y * 0.2)                           # leaky select
        o_ref[0] = y.astype(o_ref.dtype)

    return kernel


@jax.jit
def conv_transpose_leaky(x_nchw, w_torch, bias):
    """x_nchw: (N, CIN, H, W) f32; w_torch: (CIN, COUT, K, K); bias: (COUT,).

    Returns (N, COUT, H+K-1, W+K-1) f32 in NCHW (PyTorch convention).
    """
    n, cin, h, w = x_nchw.shape
    assert cin == CIN
    ho, wo = h + K - 1, w + K - 1            # output spatial
    wp = w + 2 * (K - 1)                     # fat row width (W + left/right pad)
    m_fat = ho * wp                          # fat output columns per image

    # One tiny wrapper-side pad (HBM-bound, negligible) + free reshape.  Bottom
    # gets K-1 pad rows plus K-1 extra zero rows so the largest tap shift
    # ((K-1)*WP + K-1) plus M_FAT stays inside the flat buffer.
    x_pad = jnp.pad(x_nchw,
                    ((0, 0), (0, 0), (K - 1, 2 * (K - 1)), (K - 1, K - 1)))
    hp_ext = h + 3 * (K - 1)
    xlen = hp_ext * wp
    x_flat = x_pad.reshape(n, CIN, xlen).astype(MATMUL_DTYPE)

    # Flipped-kernel cross-correlation weights, laid out for one 128-deep
    # contraction: w2[co, (kh*K+kw)*CIN + ci] = W[ci, co, K-1-kh, K-1-kw].
    w_flip = jnp.transpose(w_torch[:, :, ::-1, ::-1], (2, 3, 0, 1))  # (K,K,CIN,COUT)
    w2 = w_flip.reshape(K * K * CIN, COUT).T.astype(MATMUL_DTYPE)    # (COUT, K*K*CIN)
    b2 = bias.reshape(COUT, 1).astype(jnp.float32)

    out_fat = pl.pallas_call(
        _make_kernel(m_fat, wp),
        out_shape=jax.ShapeDtypeStruct((n, COUT, m_fat), jnp.float32),
        grid=(n,),
        in_specs=[
            pl.BlockSpec((1, CIN, xlen), lambda b: (b, 0, 0)),
            pl.BlockSpec((COUT, K * K * CIN), lambda b: (0, 0)),
            pl.BlockSpec((COUT, 1), lambda b: (0, 0)),
        ],
        out_specs=pl.BlockSpec((1, COUT, m_fat), lambda b: (b, 0, 0)),
        compiler_params=pltpu.CompilerParams(
            dimension_semantics=("parallel",)),
    )(x_flat, w2, b2)

    # Free reshape + small strided slice: drop the (WP - WO) junk columns.
    return out_fat.reshape(n, COUT, ho, wp)[..., :wo]


def _reference_numpy(x_nchw, w_torch, bias):
    """Adjoint-scatter reference for ConvTranspose2d(stride=1) + leaky select."""
    x = np.asarray(x_nchw, dtype=np.float64)
    w = np.asarray(w_torch, dtype=np.float64)
    b = np.asarray(bias, dtype=np.float64)
    n, cin, h, ww = x.shape
    out = np.zeros((n, COUT, h + K - 1, ww + K - 1), dtype=np.float64)
    out += b[None, :, None, None]
    for kh in range(K):
        for kw in range(K):
            out[:, :, kh:kh + h, kw:kw + ww] += np.einsum(
                'nihw,io->nohw', x, w[:, :, kh, kw])
    return np.where(out > 0, out, out * 0.2).astype(np.float32)


if __name__ == "__main__":
    key = jax.random.PRNGKey(0)
    k_x, k_w, k_b = jax.random.split(key, 3)

    # Small deterministic inputs: batch=2, channels fixed at 32 by the module,
    # spatial 16x16 (output becomes 17x17).
    N, H, W = 2, 16, 16
    x = jax.random.normal(k_x, (N, CIN, H, W), dtype=jnp.float32)

    # Deterministic init matching torch.nn.ConvTranspose2d(32, 32, [2, 2]).
    fan = CIN * K * K
    bound = 1.0 / np.sqrt(fan)
    w_torch = jax.random.uniform(k_w, (CIN, COUT, K, K),
                                 minval=-bound, maxval=bound, dtype=jnp.float32)
    bias = jax.random.uniform(k_b, (COUT,), minval=-bound, maxval=bound,
                              dtype=jnp.float32)

    out = jax.block_until_ready(conv_transpose_leaky(x, w_torch, bias))

    ref = _reference_numpy(x, w_torch, bias)
    np.testing.assert_allclose(np.asarray(out), ref, rtol=1e-3, atol=1e-3)

    print("KERNEL_OK")
</pallas_src>

<mosaic_0001>
module attributes {stable_mosaic.version = 11 : i64} {
  func.func @kernel(%arg0: i32, %arg1: memref<1x32x342xf32, #tpu.memory_space<vmem>>, %arg2: memref<32x128xf32, #tpu.memory_space<vmem>>, %arg3: memref<32x1xf32, #tpu.memory_space<vmem>>, %arg4: memref<1x32x306xf32, #tpu.memory_space<vmem>>) attributes {dimension_semantics = [#tpu.dimension_semantics<parallel>], iteration_bounds = array<i64: 2>, scalar_prefetch = 0 : i64, scratch_operands = 0 : i64, tpu.core_type = #tpu.core_type<tc>, window_params = [{transform_indices = @transform_0, window_bounds = array<i64: 1, 32, 342>}, {pipeline_mode = #tpu.pipeline_mode<synchronous>, transform_indices = @transform_1, window_bounds = array<i64: 32, 128>}, {pipeline_mode = #tpu.pipeline_mode<synchronous>, transform_indices = @transform_2, window_bounds = array<i64: 32, 1>}, {transform_indices = @transform_3, window_bounds = array<i64: 1, 32, 306>}]} {
    %c0 = arith.constant 0 : index
    %c0_0 = arith.constant 0 : index
    %c0_1 = arith.constant 0 : index
    %0 = vector.load %arg1[%c0, %c0_0, %c0_1] : memref<1x32x342xf32, #tpu.memory_space<vmem>>, vector<1x32x342xf32>
    %1 = vector.shape_cast %0 : vector<1x32x342xf32> to vector<32x342xf32>
    %2 = vector.extract_strided_slice %1 {offsets = [0, 0], sizes = [32, 306], strides = [1, 1]} : vector<32x342xf32> to vector<32x306xf32>
    %3 = vector.extract_strided_slice %1 {offsets = [0, 1], sizes = [32, 306], strides = [1, 1]} : vector<32x342xf32> to vector<32x306xf32>
    %4 = vector.extract_strided_slice %1 {offsets = [0, 18], sizes = [32, 306], strides = [1, 1]} : vector<32x342xf32> to vector<32x306xf32>
    %5 = vector.extract_strided_slice %1 {offsets = [0, 19], sizes = [32, 306], strides = [1, 1]} : vector<32x342xf32> to vector<32x306xf32>
    %6 = tpu.concatenate %2, %3, %4, %5 in 0 : vector<32x306xf32>, vector<32x306xf32>, vector<32x306xf32>, vector<32x306xf32> -> vector<128x306xf32>
    %c0_2 = arith.constant 0 : index
    %c0_3 = arith.constant 0 : index
    %7 = vector.load %arg2[%c0_2, %c0_3] : memref<32x128xf32, #tpu.memory_space<vmem>>, vector<32x128xf32>
    %cst = arith.constant dense<0.000000e+00> : vector<32x306xf32>
    %8 = tpu.matmul %7, %6, %cst {dimension_numbers = #tpu.dot_dimension_numbers<[1], [0], [0], [1], [0, 0, 1, 1], [], []>} : vector<32x128xf32>, vector<128x306xf32>, vector<32x306xf32> -> vector<32x306xf32>
    %c0_4 = arith.constant 0 : index
    %c0_5 = arith.constant 0 : index
    %9 = vector.load %arg3[%c0_4, %c0_5] : memref<32x1xf32, #tpu.memory_space<vmem>>, vector<32x1xf32>
    %10 = vector.broadcast %9 : vector<32x1xf32> to vector<32x306xf32>
    %11 = arith.addf %8, %10 : vector<32x306xf32>
    %cst_6 = arith.constant 0.000000e+00 : f32
    %12 = vector.broadcast %cst_6 : f32 to vector<32x306xf32>
    %13 = arith.cmpf ogt, %11, %12 : vector<32x306xf32>
    %cst_7 = arith.constant 2.000000e-01 : f32
    %14 = vector.broadcast %cst_7 : f32 to vector<32x306xf32>
    %15 = arith.mulf %11, %14 : vector<32x306xf32>
    %16 = arith.select %13, %11, %15 : vector<32x306xi1>, vector<32x306xf32>
    %c0_8 = arith.constant 0 : index
    %c0_9 = arith.constant 0 : index
    %c0_10 = arith.constant 0 : index
    %17 = vector.load %arg4[%c0_8, %c0_9, %c0_10] : memref<1x32x306xf32, #tpu.memory_space<vmem>>, vector<1x32x306xf32>
    %18 = vector.shape_cast %17 : vector<1x32x306xf32> to vector<32x306xf32>
    %19 = vector.shape_cast %16 : vector<32x306xf32> to vector<1x32x306xf32>
    tpu.vector_store %arg4[%c0_8, %c0_9, %c0_10], %19 {strides = array<i32>} : memref<1x32x306xf32, #tpu.memory_space<vmem>>, vector<1x32x306xf32>,
    return
  }
  func.func @transform_0(%arg0: i32) -> (i32, i32, i32) {
    %c0_i32 = arith.constant 0 : i32
    %c0_i32_0 = arith.constant 0 : i32
    %c0_i32_1 = arith.constant 0 : i32
    return %arg0, %c0_i32, %c0_i32_0 : i32, i32, i32
  }
  func.func @transform_1(%arg0: i32) -> (i32, i32) {
    %c0_i32 = arith.constant 0 : i32
    %c0_i32_0 = arith.constant 0 : i32
    %c0_i32_1 = arith.constant 0 : i32
    return %c0_i32, %c0_i32_0 : i32, i32
  }
  func.func @transform_2(%arg0: i32) -> (i32, i32) {
    %c0_i32 = arith.constant 0 : i32
    %c0_i32_0 = arith.constant 0 : i32
    %c0_i32_1 = arith.constant 0 : i32
    return %c0_i32, %c0_i32_0 : i32, i32
  }
  func.func @transform_3(%arg0: i32) -> (i32, i32, i32) {
    %c0_i32 = arith.constant 0 : i32
    %c0_i32_0 = arith.constant 0 : i32
    %c0_i32_1 = arith.constant 0 : i32
    return %arg0, %c0_i32, %c0_i32_0 : i32, i32, i32
  }
}

</mosaic_0001>

<llo_original>
// kernel: conv_transpose_leaky.1
$region0: #{conv_transpose_leaky.1}
  #allocation0 [shape = 'u32[]', space=smem, size = 0x4, offset = 0x4, fixed_abs, tag = 'smem constant byte address 0x4 - core index']
  #allocation1 [shape = 'u32[72,128]{1,0:T(1,128)}', space=vmem, size = 0x9000, scoped, tag = 'internal scratch']
  %s0 = inlined_call_operand.vmem [shape: f32[2,32,342], index: 0, kind: input, shape index: {}]
  %s1 = inlined_call_operand.vmem [shape: f32[32,128], index: 1, kind: input, shape index: {}]
  %s2 = inlined_call_operand.vmem [shape: f32[32,1], index: 2, kind: input, shape index: {}]
  %s3 = inlined_call_operand.vmem [shape: f32[2,32,306], index: 3, kind: output, shape index: {}]
  %s4 = sld [smem:[#allocation0]]
  $region45: #{conv_transpose_leaky.1} parent=0
    _
  %s6 = ssub.s32 1, %s4
  %s7 = scalar_select 0, %s6, %s4
  loop: start=0, step=1, limit=4
  $region2: #{conv_transpose_leaky.1} parent=0 // loop_pre_header
    _
  $region3: #{conv_transpose_leaky.1} parent=0 // loop_header
    %s9 = sphi 0, %s13
    %p10 = scmp.ge.s32.totalorder %s9, 4
    %s19 = sphi 0, %s21
    %s22 = sphi 0, %s19
    %s23 = sphi 0, %s22
    %s39 = sphi 0, %s23
    %s43 = sphi 0, %s43
    %s45 = sphi 0, %s43
    %s46 = sphi 0, %s45
    %s60 = sphi 0, %s46
    %s64 = sphi 0, %s64
    %s66 = sphi 0, %s64
    %s67 = sphi 0, %s66
    %s81 = sphi 0, %s67
    %s87 = sphi 0, %s89
    %s90 = sphi 0, %s87
    %s91 = sphi 0, %s90
    %s107 = sphi 0, %s91
  $region4: #{conv_transpose_leaky.1} parent=0 // loop_header_branch
    %12 = sbr.rel (%p10) target = $region8
  $region5: #{conv_transpose_leaky.1} parent=0 // loop_body
    %s14 = ssub.s32 %s9, 1
    %s15 = ssub.s32 %s9, 2
    %s16 = sadd.s32 %s9, 1
    %s17 = ssub.s32 %s9, %s16
    %p18 = scmp.eq.s32.totalorder %s17, 0
    %s20 = sadd.s32 %s19, 1
    %s21 = scalar_select %p18, %s19, %s20
    %p24 = pneg %p18
    %p25 = scmp.eq.s32.totalorder %s9, 1
    %p26 = por %p24, %p25
    %p27 = scmp.ne.s32.totalorder %s19, %s22
    %p28 = scmp.eq.s32.totalorder %s9, 0
    %p29 = por %p27, %p28
    %p30 = scmp.ne.s32.totalorder %s19, %s22
    %p31 = scmp.eq.s32.totalorder %s14, 1
    %p32 = por %p30, %p31
    %p33 = scmp.ne.s32.totalorder %s22, %s23
    %p34 = scmp.eq.s32.totalorder %s14, 0
    %p35 = por %p33, %p34
    %p36 = scmp.ne.s32.totalorder %s22, %s23
    %p37 = scmp.eq.s32.totalorder %s15, 1
    %p38 = por %p36, %p37
    %p40 = scmp.ne.s32.totalorder %s23, %s39
    %p41 = scmp.eq.s32.totalorder %s15, 0
    %p42 = por %p40, %p41
    %s44 = sadd.s32 %s43, 1
    %p47 = scmp.eq.s32.totalorder %s9, 1
    %p48 = scmp.ne.s32.totalorder %s43, %s45
    %p49 = scmp.eq.s32.totalorder %s9, 0
    %p50 = por %p48, %p49
    %p51 = scmp.ne.s32.totalorder %s43, %s45
    %p52 = scmp.eq.s32.totalorder %s14, 1
    %p53 = por %p51, %p52
    %p54 = scmp.ne.s32.totalorder %s45, %s46
    %p55 = scmp.eq.s32.totalorder %s14, 0
    %p56 = por %p54, %p55
    %p57 = scmp.ne.s32.totalorder %s45, %s46
    %p58 = scmp.eq.s32.totalorder %s15, 1
    %p59 = por %p57, %p58
    %p61 = scmp.ne.s32.totalorder %s46, %s60
    %p62 = scmp.eq.s32.totalorder %s15, 0
    %p63 = por %p61, %p62
    %s65 = sadd.s32 %s64, 1
    %p68 = scmp.eq.s32.totalorder %s9, 1
    %p69 = scmp.ne.s32.totalorder %s64, %s66
    %p70 = scmp.eq.s32.totalorder %s9, 0
    %p71 = por %p69, %p70
    %p72 = scmp.ne.s32.totalorder %s64, %s66
    %p73 = scmp.eq.s32.totalorder %s14, 1
    %p74 = por %p72, %p73
    %p75 = scmp.ne.s32.totalorder %s66, %s67
    %p76 = scmp.eq.s32.totalorder %s14, 0
    %p77 = por %p75, %p76
    %p78 = scmp.ne.s32.totalorder %s66, %s67
    %p79 = scmp.eq.s32.totalorder %s15, 1
    %p80 = por %p78, %p79
    %p82 = scmp.ne.s32.totalorder %s67, %s81
    %p83 = scmp.eq.s32.totalorder %s15, 0
    %p84 = por %p82, %p83
    %s85 = ssub.s32 %s9, %s16
    %p86 = scmp.eq.s32.totalorder %s85, 0
    %s88 = sadd.s32 %s87, 1
    %s89 = scalar_select %p86, %s87, %s88
    %p92 = pneg %p86
    %p93 = scmp.eq.s32.totalorder %s9, 1
    %p94 = por %p92, %p93
    %p95 = scmp.ne.s32.totalorder %s87, %s90
    %p96 = scmp.eq.s32.totalorder %s9, 0
    %p97 = por %p95, %p96
    %p98 = scmp.ne.s32.totalorder %s87, %s90
    %p99 = scmp.eq.s32.totalorder %s14, 1
    %p100 = por %p98, %p99
    %p101 = scmp.ne.s32.totalorder %s90, %s91
    %p102 = scmp.eq.s32.totalorder %s14, 0
    %p103 = por %p101, %p102
    %p104 = scmp.ne.s32.totalorder %s90, %s91
    %p105 = scmp.eq.s32.totalorder %s15, 1
    %p106 = por %p104, %p105
    %p108 = scmp.ne.s32.totalorder %s91, %s107
    %p109 = scmp.eq.s32.totalorder %s15, 0
    %p110 = por %p108, %p109
    %p111 = scmp.le.s32.totalorder 1, %s9
    %p112 = scmp.lt.s32.totalorder %s9, 3
    %p113 = pnand %p111, %p112
    %p114 = pneg %p113
    // Predicated region
    $region9: #{conv_transpose_leaky.1} parent=5 // pred_check
      _
    $region10: #{conv_transpose_leaky.1} parent=5 // pred_check_branch
      %116 = sbr.rel (%p113) target = $region12
    $region11: #{conv_transpose_leaky.1} parent=5 // pred_region
      %s117 = ssub.s32 %s9, 1
      // Predicated region
      $region13: #{conv_transpose_leaky.1} parent=11 // pred_check
        %p118 = pneg %p56
      $region14: #{conv_transpose_leaky.1} parent=11 // pred_check_branch
        %120 = sbr.rel (%p118) target = $region16
      $region15: #{conv_transpose_leaky.1} parent=11 // pred_region
        _
      $region16: #{conv_transpose_leaky.1} parent=11 // pred_fallthru
        _
      // Predicated region
      $region17: #{conv_transpose_leaky.1} parent=11 // pred_check
        %p121 = pneg %p77
      $region18: #{conv_transpose_leaky.1} parent=11 // pred_check_branch
        %123 = sbr.rel (%p121) target = $region20
      $region19: #{conv_transpose_leaky.1} parent=11 // pred_region
        _
      $region20: #{conv_transpose_leaky.1} parent=11 // pred_fallthru
        _
    $region12: #{conv_transpose_leaky.1} parent=5 // pred_fallthru
      _
    %p124 = scmp.lt.s32.totalorder %s9, 2
    // Predicated region
    $region21: #{conv_transpose_leaky.1} parent=5 // pred_check
      %p125 = pneg %p124
    $region22: #{conv_transpose_leaky.1} parent=5 // pred_check_branch
      %127 = sbr.rel (%p125) target = $region24
    $region23: #{conv_transpose_leaky.1} parent=5 // pred_region
      // Predicated region
      $region25: #{conv_transpose_leaky.1} parent=23 // pred_check
        %p128 = pneg %p29
      $region26: #{conv_transpose_leaky.1} parent=23 // pred_check_branch
        %130 = sbr.rel (%p128) target = $region28
      $region27: #{conv_transpose_leaky.1} parent=23 // pred_region
        %p131 = scmp.lt.s32.totalorder %s9, 1
        %s132 = scalar_select %p131, %s9, 1
        %s133 = smul.addr %s132, 12
        %s134 = smul.addr %s133, 8
        %s135 = scalar_lea.vmem %s0, %s134
      $region28: #{conv_transpose_leaky.1} parent=23 // pred_fallthru
        _
    $region24: #{conv_transpose_leaky.1} parent=5 // pred_fallthru
      _
    %p136 = scmp.le.s32.totalorder 1, %s9
    %p137 = scmp.lt.s32.totalorder %s9, 3
    %p138 = pnand %p136, %p137
    %p139 = pneg %p138
    // Predicated region
    $region29: #{conv_transpose_leaky.1} parent=5 // pred_check
      _
    $region30: #{conv_transpose_leaky.1} parent=5 // pred_check_branch
      %141 = sbr.rel (%p138) target = $region32
    $region31: #{conv_transpose_leaky.1} parent=5 // pred_region
      %s142 = ssub.s32 %s9, 1
      %p143 = scmp.lt.s32.totalorder %s14, 1
      %s144 = scalar_select %p143, %s14, 1
      %s145 = smul.addr %s144, 12
      %s146 = smul.addr %s145, 8
      %s147 = scalar_lea.vmem %s0, %s146
      %p148 = pneg %p35
      %p149 = pneg %p32
      %p150 = pneg %p56
      %p151 = pneg %p53
      %p152 = pneg %p77
      %p153 = pneg %p74
      %p154 = pneg %p103
      %p155 = pneg %p100
      %p156 = scmp.lt.s32.totalorder %s14, 1
      %s157 = scalar_select %p156, %s14, 1
      %s158 = smul.addr %s157, 12
      %s159 = smul.addr %s158, 8
      %s160 = scalar_lea.vmem %s3, %s159
      %p161 = scmp.lt.s32.totalorder %s14, 1
      %s162 = scalar_select %p161, %s14, 1
      %s163 = smul.addr %s162, 12
      %s164 = smul.addr %s163, 8
      %s165 = scalar_lea.vmem %s0, %s164
      %p166 = scmp.lt.s32.totalorder %s14, 1
      %s167 = scalar_select %p166, %s14, 1
      %s168 = smul.addr %s167, 12
      %s169 = smul.addr %s168, 8
      %s170 = scalar_lea.vmem %s3, %s169
      %v171 = vld [vmem:[%s165] sm:$0xff]
      %v172 = vld [vmem:[%s165 + $0x8] sm:$0xff]
      %v173 = vld [vmem:[%s165 + $0x10] sm:$0xff]
      %v174 = vld [vmem:[%s165 + $0x18] sm:$0xff]
      %v175 = vld [vmem:[%s165 + $0x20] sm:$0xff]
      %v176 = vld [vmem:[%s165 + $0x28] sm:$0xff]
      %v177 = vld [vmem:[%s165 + $0x30] sm:$0xff]
      %v178 = vld [vmem:[%s165 + $0x38] sm:$0xff]
      %v179 = vld [vmem:[%s165 + $0x40] sm:$0xff]
      %v180 = vld [vmem:[%s165 + $0x48] sm:$0xff]
      %v181 = vld [vmem:[%s165 + $0x50] sm:$0xff]
      %v182 = vld [vmem:[%s165 + $0x58] sm:$0xff]
      %195 = vrot.lane.b32.xlu0 %v171, 127
      %v196 = vpop.permute.xlu0 %195
      %197 = vrot.lane.b32.xlu0 %v172, 127
      %v198 = vpop.permute.xlu0 %197
      %199 = vrot.lane.b32.xlu0 %v173, 127
      %v200 = vpop.permute.xlu0 %199
      %201 = vrot.lane.b32.xlu0 %v174, 127
      %v202 = vpop.permute.xlu0 %201
      %203 = vrot.lane.b32.xlu0 %v175, 127
      %v204 = vpop.permute.xlu0 %203
      %205 = vrot.lane.b32.xlu0 %v176, 127
      %v206 = vpop.permute.xlu0 %205
      %207 = vrot.lane.b32.xlu0 %v177, 127
      %v208 = vpop.permute.xlu0 %207
      %209 = vrot.lane.b32.xlu0 %v178, 127
      %v210 = vpop.permute.xlu0 %209
      %211 = vrot.lane.b32.xlu0 %v179, 127
      %v212 = vpop.permute.xlu0 %211
      %213 = vrot.lane.b32.xlu0 %v180, 127
      %v214 = vpop.permute.xlu0 %213
      %215 = vrot.lane.b32.xlu0 %v181, 127
      %v216 = vpop.permute.xlu0 %215
      %217 = vrot.lane.b32.xlu0 %v182, 127
      %v218 = vpop.permute.xlu0 %217
      %vm219 = vcmask 1039360
      %v220 = vsel %vm219, %v196, %v198
      %v221 = vsel %vm219, %v198, %v200
      %v222 = vsel %vm219, %v202, %v204
      %v223 = vsel %vm219, %v204, %v206
      %v224 = vsel %vm219, %v208, %v210
      %v225 = vsel %vm219, %v210, %v212
      %v226 = vsel %vm219, %v214, %v216
      %v227 = vsel %vm219, %v216, %v218
      %240 = vrot.lane.b32.xlu0 %v171, 110
      %v241 = vpop.permute.xlu0 %240
      %242 = vrot.lane.b32.xlu0 %v172, 110
      %v243 = vpop.permute.xlu0 %242
      %244 = vrot.lane.b32.xlu0 %v173, 110
      %v245 = vpop.permute.xlu0 %244
      %246 = vrot.lane.b32.xlu0 %v174, 110
      %v247 = vpop.permute.xlu0 %246
      %248 = vrot.lane.b32.xlu0 %v175, 110
      %v249 = vpop.permute.xlu0 %248
      %250 = vrot.lane.b32.xlu0 %v176, 110
      %v251 = vpop.permute.xlu0 %250
      %252 = vrot.lane.b32.xlu0 %v177, 110
      %v253 = vpop.permute.xlu0 %252
      %254 = vrot.lane.b32.xlu0 %v178, 110
      %v255 = vpop.permute.xlu0 %254
      %256 = vrot.lane.b32.xlu0 %v179, 110
      %v257 = vpop.permute.xlu0 %256
      %258 = vrot.lane.b32.xlu0 %v180, 110
      %v259 = vpop.permute.xlu0 %258
      %260 = vrot.lane.b32.xlu0 %v181, 110
      %v261 = vpop.permute.xlu0 %260
      %262 = vrot.lane.b32.xlu0 %v182, 110
      %v263 = vpop.permute.xlu0 %262
      %vm264 = vcmask 900096
      %v265 = vsel %vm264, %v241, %v243
      %v266 = vsel %vm264, %v243, %v245
      %v267 = vsel %vm264, %v247, %v249
      %v268 = vsel %vm264, %v249, %v251
      %v269 = vsel %vm264, %v253, %v255
      %v270 = vsel %vm264, %v255, %v257
      %v271 = vsel %vm264, %v259, %v261
      %v272 = vsel %vm264, %v261, %v263
      %285 = vrot.lane.b32.xlu0 %v171, 109
      %v286 = vpop.permute.xlu0 %285
      %287 = vrot.lane.b32.xlu0 %v172, 109
      %v288 = vpop.permute.xlu0 %287
      %289 = vrot.lane.b32.xlu0 %v173, 109
      %v290 = vpop.permute.xlu0 %289
      %291 = vrot.lane.b32.xlu0 %v174, 109
      %v292 = vpop.permute.xlu0 %291
      %293 = vrot.lane.b32.xlu0 %v175, 109
      %v294 = vpop.permute.xlu0 %293
      %295 = vrot.lane.b32.xlu0 %v176, 109
      %v296 = vpop.permute.xlu0 %295
      %297 = vrot.lane.b32.xlu0 %v177, 109
      %v298 = vpop.permute.xlu0 %297
      %299 = vrot.lane.b32.xlu0 %v178, 109
      %v300 = vpop.permute.xlu0 %299
      %301 = vrot.lane.b32.xlu0 %v179, 109
      %v302 = vpop.permute.xlu0 %301
      %303 = vrot.lane.b32.xlu0 %v180, 109
      %v304 = vpop.permute.xlu0 %303
      %305 = vrot.lane.b32.xlu0 %v181, 109
      %v306 = vpop.permute.xlu0 %305
      %307 = vrot.lane.b32.xlu0 %v182, 109
      %v308 = vpop.permute.xlu0 %307
      %vm309 = vcmask 891904
      %v310 = vsel %vm309, %v286, %v288
      %v311 = vsel %vm309, %v288, %v290
      %v312 = vsel %vm309, %v292, %v294
      %v313 = vsel %vm309, %v294, %v296
      %v314 = vsel %vm309, %v298, %v300
      %v315 = vsel %vm309, %v300, %v302
      %v316 = vsel %vm309, %v304, %v306
      %v317 = vsel %vm309, %v306, %v308
      %v330 = vld [vmem:[%s1] sm:$0xff]
      %v331 = vld [vmem:[%s1 + $0x8] sm:$0xff]
      %v332 = vld [vmem:[%s1 + $0x10] sm:$0xff]
      %v333 = vld [vmem:[%s1 + $0x18] sm:$0xff]
      %v334 = vld [vmem:[%s2] sm:$0xff]
      %v335 = vld [vmem:[%s2 + $0x8] sm:$0xff]
      %v336 = vld [vmem:[%s2 + $0x10] sm:$0xff]
      %v337 = vld [vmem:[%s2 + $0x18] sm:$0xff]
      %339 = vset.pattern.permute.xlu0 0
      %340 = vperm.xlu0 %339, %v334
      %v341 = vpop.permute.xlu0 %340
      %344 = vset.pattern.permute.xlu0 0
      %345 = vperm.xlu0 %344, %v335
      %v346 = vpop.permute.xlu0 %345
      %349 = vset.pattern.permute.xlu0 0
      %350 = vperm.xlu0 %349, %v336
      %v351 = vpop.permute.xlu0 %350
      %354 = vset.pattern.permute.xlu0 0
      %355 = vperm.xlu0 %354, %v337
      %v356 = vpop.permute.xlu0 %355
      %358 = vmatpush.msra.mxu0 %v316
      %359 = vmatpush.msra.mxu0 %v314
      %360 = vmatpush.msra.mxu0 %v312
      %361 = vmatpush.msra.mxu0 %v310
      %362 = vmatpush.msra.mxu0 %v271
      %363 = vmatpush.msra.mxu0 %v269
      %364 = vmatpush.msra.mxu0 %v267
      %365 = vmatpush.msra.mxu0 %v265
      %366 = vmatpush.msra.mxu0 %v226
      %367 = vmatpush.msra.mxu0 %v224
      %368 = vmatpush.msra.mxu0 %v222
      %369 = vmatpush.msra.mxu0 %v220
      %370 = vmatpush.msra.mxu0 %v180
      %371 = vmatpush.msra.mxu0 %v177
      %372 = vmatpush.msra.mxu0 %v174
      %373 = vmatpush.msra.mxu0 %v171
      %374 = vmatmul.f32.gmra.mxu0 %v330
      %v375 = vpop.f32.mrf.mxu0
      %v376 = vadd.f32 %v341, %v375
      %377 = vmatmul.f32.gmra.mxu0 %v331
      %v378 = vpop.f32.mrf.mxu0
      %v379 = vadd.f32 %v346, %v378
      %380 = vmatmul.f32.gmra.mxu0 %v332
      %v381 = vpop.f32.mrf.mxu0
      %v382 = vadd.f32 %v351, %v381
      %383 = vmatmul.f32.gmra.mxu0 %v333
      %v384 = vpop.f32.mrf.mxu0
      %v385 = vadd.f32 %v356, %v384
      %386 = vdwg.mxu0
      %387 = vmatpush.msra.mxu0 %v317
      %388 = vmatpush.msra.mxu0 %v315
      %389 = vmatpush.msra.mxu0 %v313
      %390 = vmatpush.msra.mxu0 %v311
      %391 = vmatpush.msra.mxu0 %v272
      %392 = vmatpush.msra.mxu0 %v270
      %393 = vmatpush.msra.mxu0 %v268
      %394 = vmatpush.msra.mxu0 %v266
      %395 = vmatpush.msra.mxu0 %v227
      %396 = vmatpush.msra.mxu0 %v225
      %397 = vmatpush.msra.mxu0 %v223
      %398 = vmatpush.msra.mxu0 %v221
      %399 = vmatpush.msra.mxu0 %v181
      %400 = vmatpush.msra.mxu0 %v178
      %401 = vmatpush.msra.mxu0 %v175
      %402 = vmatpush.msra.mxu0 %v172
      %403 = vmatmul.f32.gmra.mxu0 %v330
      %v404 = vpop.f32.mrf.mxu0
      %v405 = vadd.f32 %v341, %v404
      %406 = vmatmul.f32.gmra.mxu0 %v331
      %v407 = vpop.f32.mrf.mxu0
      %v408 = vadd.f32 %v346, %v407
      %409 = vmatmul.f32.gmra.mxu0 %v332
      %v410 = vpop.f32.mrf.mxu0
      %v411 = vadd.f32 %v351, %v410
      %412 = vmatmul.f32.gmra.mxu0 %v333
      %v413 = vpop.f32.mrf.mxu0
      %v414 = vadd.f32 %v356, %v413
      %415 = vdwg.mxu0
      %416 = vmatpush.msra.mxu0 %v308
      %417 = vmatpush.msra.mxu0 %v302
      %418 = vmatpush.msra.mxu0 %v296
      %419 = vmatpush.msra.mxu0 %v290
      %420 = vmatpush.msra.mxu0 %v263
      %421 = vmatpush.msra.mxu0 %v257
      %422 = vmatpush.msra.mxu0 %v251
      %423 = vmatpush.msra.mxu0 %v245
      %424 = vmatpush.msra.mxu0 %v218
      %425 = vmatpush.msra.mxu0 %v212
      %426 = vmatpush.msra.mxu0 %v206
      %427 = vmatpush.msra.mxu0 %v200
      %428 = vmatpush.msra.mxu0 %v182
      %429 = vmatpush.msra.mxu0 %v179
      %430 = vmatpush.msra.mxu0 %v176
      %431 = vmatpush.msra.mxu0 %v173
      %432 = vmatmul.f32.gmra.mxu0 %v330
      %v433 = vpop.f32.mrf.mxu0
      %v434 = vadd.f32 %v341, %v433
      %435 = vmatmul.f32.gmra.mxu0 %v331
      %v436 = vpop.f32.mrf.mxu0
      %v437 = vadd.f32 %v346, %v436
      %438 = vmatmul.f32.gmra.mxu0 %v332
      %v439 = vpop.f32.mrf.mxu0
      %v440 = vadd.f32 %v351, %v439
      %441 = vmatmul.f32.gmra.mxu0 %v333
      %v442 = vpop.f32.mrf.mxu0
      %v443 = vadd.f32 %v356, %v442
      %444 = vdwg.mxu0
      %vm445 = vcmp.gt.f32.partialorder %v376, 0.0
      %vm446 = vcmp.gt.f32.partialorder %v405, 0.0
      %vm447 = vcmp.gt.f32.partialorder %v434, 0.0
      %vm448 = vcmp.gt.f32.partialorder %v379, 0.0
      %vm449 = vcmp.gt.f32.partialorder %v408, 0.0
      %vm450 = vcmp.gt.f32.partialorder %v437, 0.0
      %vm451 = vcmp.gt.f32.partialorder %v382, 0.0
      %vm452 = vcmp.gt.f32.partialorder %v411, 0.0
      %vm453 = vcmp.gt.f32.partialorder %v440, 0.0
      %vm454 = vcmp.gt.f32.partialorder %v385, 0.0
      %vm455 = vcmp.gt.f32.partialorder %v414, 0.0
      %vm456 = vcmp.gt.f32.partialorder %v443, 0.0
      %v457 = vmul.f32 %v376, 0.2
      %v458 = vmul.f32 %v405, 0.2
      %v459 = vmul.f32 %v434, 0.2
      %v460 = vmul.f32 %v379, 0.2
      %v461 = vmul.f32 %v408, 0.2
      %v462 = vmul.f32 %v437, 0.2
      %v463 = vmul.f32 %v382, 0.2
      %v464 = vmul.f32 %v411, 0.2
      %v465 = vmul.f32 %v440, 0.2
      %v466 = vmul.f32 %v385, 0.2
      %v467 = vmul.f32 %v414, 0.2
      %v468 = vmul.f32 %v443, 0.2
      %v469 = vsel %vm445, %v376, %v457
      %v470 = vsel %vm446, %v405, %v458
      %v471 = vsel %vm447, %v434, %v459
      %v472 = vsel %vm448, %v379, %v460
      %v473 = vsel %vm449, %v408, %v461
      %v474 = vsel %vm450, %v437, %v462
      %v475 = vsel %vm451, %v382, %v463
      %v476 = vsel %vm452, %v411, %v464
      %v477 = vsel %vm453, %v440, %v465
      %v478 = vsel %vm454, %v385, %v466
      %v479 = vsel %vm455, %v414, %v467
      %v480 = vsel %vm456, %v443, %v468
      %481 = vst [vmem:[%s170] sm:$0xff] %v469
      %482 = vst [vmem:[%s170 + $0x8] sm:$0xff] %v470
      %vm483 = vcmask 408576
      %484 = vst.msk [vmem:[%s170 + $0x10] sm:$0xff] %vm483, %v471
      %485 = vst [vmem:[%s170 + $0x18] sm:$0xff] %v472
      %486 = vst [vmem:[%s170 + $0x20] sm:$0xff] %v473
      %487 = vst.msk [vmem:[%s170 + $0x28] sm:$0xff] %vm483, %v474
      %488 = vst [vmem:[%s170 + $0x30] sm:$0xff] %v475
      %489 = vst [vmem:[%s170 + $0x38] sm:$0xff] %v476
      %490 = vst.msk [vmem:[%s170 + $0x40] sm:$0xff] %vm483, %v477
      %491 = vst [vmem:[%s170 + $0x48] sm:$0xff] %v478
      %492 = vst [vmem:[%s170 + $0x50] sm:$0xff] %v479
      %493 = vst.msk [vmem:[%s170 + $0x58] sm:$0xff] %vm483, %v480
      %p494 = scmp.lt.s32.totalorder %s14, 1
      %s495 = scalar_select %p494, %s14, 1
      %s496 = smul.addr %s495, 12
      %s497 = smul.addr %s496, 8
      %s498 = scalar_lea.vmem %s3, %s497
      // Predicated region
      $region33: #{conv_transpose_leaky.1} parent=31 // pred_check
        %p499 = pneg %p100
      $region34: #{conv_transpose_leaky.1} parent=31 // pred_check_branch
        %501 = sbr.rel (%p499) target = $region36
      $region35: #{conv_transpose_leaky.1} parent=31 // pred_region
        _
      $region36: #{conv_transpose_leaky.1} parent=31 // pred_fallthru
        _
    $region32: #{conv_transpose_leaky.1} parent=5 // pred_fallthru
      _
    %p502 = scmp.le.s32.totalorder 2, %s9
    // Predicated region
    $region37: #{conv_transpose_leaky.1} parent=5 // pred_check
      %p503 = pneg %p502
    $region38: #{conv_transpose_leaky.1} parent=5 // pred_check_branch
      %505 = sbr.rel (%p503) target = $region40
    $region39: #{conv_transpose_leaky.1} parent=5 // pred_region
      %s506 = ssub.s32 %s9, 2
      // Predicated region
      $region41: #{conv_transpose_leaky.1} parent=39 // pred_check
        %p507 = pneg %p106
      $region42: #{conv_transpose_leaky.1} parent=39 // pred_check_branch
        %509 = sbr.rel (%p507) target = $region44
      $region43: #{conv_transpose_leaky.1} parent=39 // pred_region
        %p510 = scmp.lt.s32.totalorder %s15, 1
        %s511 = scalar_select %p510, %s15, 1
        %s512 = smul.addr %s511, 12
        %s513 = smul.addr %s512, 8
        %s514 = scalar_lea.vmem %s3, %s513
      $region44: #{conv_transpose_leaky.1} parent=39 // pred_fallthru
        _
    $region40: #{conv_transpose_leaky.1} parent=5 // pred_fallthru
      _
  $region6: #{conv_transpose_leaky.1} parent=0 // loop_footer
    %s13 = sadd.s32 1, %s9
  $region7: #{conv_transpose_leaky.1} parent=0 // loop_footer_branch
    %8 = sbr.rel target = $region3
  $region8: #{conv_transpose_leaky.1} parent=0 // loop_exit
    _

</llo_original>
